<compile_context>
chip_gen: v6e
topology: v6e:2x2x1
jax: 0.10.0
libtpu: 0.0.40
codegen_flags: <defaults>
</compile_context>

<pallas_src>
import jax
import jax.numpy as jnp
from jax.experimental import pallas as pl
from jax.experimental.pallas import tpu as pltpu

POOL_SIZES = (5, 9, 13)          # each pool = previous ∘ pool5 (SPPF cascade)
_K = 5                           # base pooling window of the cascade
_N_FEATS = len(POOL_SIZES) + 1   # pooled branches + identity = 4


def _pad_value(dtype):
    """Identity element for `max` in the given dtype."""
    dtype = jnp.dtype(dtype)
    if jnp.issubdtype(dtype, jnp.floating):
        return jnp.array(-jnp.inf, dtype)
    return jnp.array(jnp.iinfo(dtype).min, dtype)


# -----------------------------------------------------------------------------
# VMEM sizing helpers (layout-padding aware + generation aware)
# -----------------------------------------------------------------------------

def _sublane_multiple(itemsize):
    # (8,128) f32 tiles; sub-32-bit dtypes pack along sublanes (16 bf16, 32 i8).
    return 8 if itemsize >= 4 else 8 * (4 // itemsize)


def _padded_bytes(lead, rows, cols, itemsize):
    sub = _sublane_multiple(itemsize)
    prows = -(-rows // sub) * sub
    pcols = -(-cols // 128) * 128
    return lead * prows * pcols * itemsize


def _footprint_bytes(ct, H, W, itemsize):
    """Pipelined per-step VMEM footprint for channel tile `ct` (padding-aware)."""
    HW = H * W
    in_b = 2 * _padded_bytes(1, ct, HW, itemsize)            # double-buffered input
    col_b = 2 * _padded_bytes(1, 1, HW, 4)                   # column-index input
    out_b = 2 * _padded_bytes(_N_FEATS, ct, HW, itemsize)    # double-buffered output
    pada = _padded_bytes(1, ct, (H + 4) * W, itemsize)       # H-padded scratch
    padb = _padded_bytes(1, ct, HW + 4, itemsize)            # W-pass shift scratch
    return in_b + col_b + out_b + pada + padb + (2 << 20)    # + compiler slack


def _vmem_capacity_bytes():
    try:
        cap = getattr(pltpu.get_tpu_info(), "vmem_capacity_bytes", None)
        if cap:
            return int(cap)
    except Exception:
        pass
    return 64 * 1024 * 1024       # conservative default (v7x per-core VMEM)


def _pick_channel_tile(N, C, H, W, itemsize, budget_bytes):
    """Largest channel tile that (a) satisfies the (8,128) sublane rule,
    (b) fits the padding-aware VMEM budget and (c) keeps the grid >= 2 steps
    when the batch alone cannot feed both v7x TensorCores."""
    sub = _sublane_multiple(itemsize)
    valid = [d for d in range(1, C + 1)
             if C % d == 0 and (d % sub == 0 or d == C)]
    fitting = [d for d in valid
               if d <= 512 and _footprint_bytes(d, H, W, itemsize) <= budget_bytes]
    if fitting:
        if N == 1:
            halved = [d for d in fitting if d <= C // 2]
            if halved:
                return max(halved)
        return max(fitting)
    # TODO(synk): for pathological shapes (no divisor fits) a further H-split
    # grid axis would be needed; fall back to the smallest legal tile.
    return min(valid)


# -----------------------------------------------------------------------------
# Kernel
# -----------------------------------------------------------------------------

def _make_kernel(H, W, n_pool):
    HW = H * W

    def kernel(x_ref, col_ref, o_ref, pada_ref, padb_ref):
        # x_ref:   (Ct, H*W)          lane-dense input tile
        # col_ref: (1, H*W) int32     column index of each flattened position
        # o_ref:   (4, Ct, H*W)       slots = [pool13, pool9, pool5, identity]
        Ct = x_ref.shape[0]
        neg = _pad_value(x_ref.dtype)
        x = x_ref[...]

        # Identity branch (last slot of the concat).
        o_ref[n_pool] = x

        # -inf border strips only (the interiors are overwritten every stage,
        # so the full scratch is never refilled).
        border = jnp.full((Ct, 2 * W), neg, x_ref.dtype)
        pada_ref[:, 0:2 * W] = border                        # 2 pad rows on top
        pada_ref[:, 2 * W + HW:4 * W + HW] = border          # 2 pad rows below
        edge = jnp.full((Ct, 2), neg, x_ref.dtype)
        padb_ref[:, 0:2] = edge
        padb_ref[:, HW + 2:HW + 4] = edge

        # Column-validity masks for the W pass, hoisted out of the stage loop.
        # Tap t reads column j + (t - 2); valid iff it stays inside the row.
        colb = jnp.broadcast_to(col_ref[...], (Ct, HW))
        w_taps = ((0, colb >= 2), (1, colb >= 1),
                  (3, colb < W - 1), (4, colb < W - 2))

        def pool5(cur):
            # ---- H pass: 5 vertical taps = static lane-offset slices of the
            # H-padded scratch; the -inf border rows make masks unnecessary.
            pada_ref[:, 2 * W:2 * W + HW] = cur
            xh = pada_ref[:, 0:HW]
            for di in range(1, _K):
                xh = jnp.maximum(xh, pada_ref[:, di * W:di * W + HW])
            # ---- W pass: 5 horizontal taps = static lane-offset slices;
            # row-boundary spill is masked with the precomputed column masks.
            padb_ref[:, 2:2 + HW] = xh
            out = xh                                          # centre tap
            for t, m in w_taps:
                out = jnp.maximum(out, jnp.where(m, padb_ref[:, t:t + HW], neg))
            return out

        # SPPF cascade: pool5 -> slot 2, pool5∘pool5 = pool9 -> slot 1,
        # pool5∘pool5∘pool5 = pool13 -> slot 0.
        cur = x
        for slot in range(n_pool - 1, -1, -1):
            cur = pool5(cur)
            o_ref[slot] = cur

    return kernel


# -----------------------------------------------------------------------------
# Wrapper
# -----------------------------------------------------------------------------

def spatial_pyramid_pooling(x):
    """x: (N, C, H, W) -> (N, 4*C, H, W); channels = [pool13, pool9, pool5, x]."""
    N, C, H, W = x.shape
    HW = H * W
    itemsize = jnp.dtype(x.dtype).itemsize

    cap = _vmem_capacity_bytes()
    budget = int(cap * 0.6)                    # generation-aware, with headroom
    Ct = _pick_channel_tile(N, C, H, W, itemsize, budget)
    fp = _footprint_bytes(Ct, H, W, itemsize)
    vmem_limit = int(min(cap * 0.8, max(32 << 20, int(fp * 1.5) + (8 << 20))))

    # Contiguous-merge reshapes: free in HBM, make every block lane-dense.
    x_flat = x.reshape(N, C, HW)
    col = (jnp.arange(HW, dtype=jnp.int32) % W).reshape(1, HW)

    kernel = _make_kernel(H, W, len(POOL_SIZES))

    stacked = pl.pallas_call(
        kernel,
        out_shape=jax.ShapeDtypeStruct((N, _N_FEATS, C, HW), x.dtype),
        grid=(N, C // Ct),
        in_specs=[
            # TODO(synk): sweep pipeline_mode=pl.Buffered(3) here if profiles
            # show exposed input DMA (output writeback dominates, so deepening
            # the input prefetch is cheap).
            pl.BlockSpec((None, Ct, HW), lambda n, c: (n, c, 0)),
            pl.BlockSpec((1, HW), lambda n, c: (0, 0)),
        ],
        out_specs=pl.BlockSpec((None, _N_FEATS, Ct, HW),
                               lambda n, c: (n, 0, c, 0)),
        scratch_shapes=[
            pltpu.VMEM((Ct, (H + 4) * W), x.dtype),   # H-padded working buffer
            pltpu.VMEM((Ct, HW + 4), x.dtype),        # W-pass shift buffer
        ],
        compiler_params=pltpu.CompilerParams(
            dimension_semantics=("parallel", "parallel"),
            vmem_limit_bytes=vmem_limit),
        cost_estimate=pl.CostEstimate(
            flops=8 * len(POOL_SIZES) * N * C * HW,
            transcendentals=0,
            bytes_accessed=(_N_FEATS + 1) * N * C * HW * itemsize),
    )(x_flat, col)

    # (N, 4, C, H*W) -> (N, 4*C, H, W): contiguous merge/split (layout-free),
    # reproducing torch.cat([p13, p9, p5, x], dim=1) exactly.
    return stacked.reshape(N, _N_FEATS * C, H, W)


# -----------------------------------------------------------------------------
# Plain-JAX reference (float inputs only) and self-test
# -----------------------------------------------------------------------------

def _reference(x):
    """reduce_window reference matching PyTorch MaxPool2d(k, 1, k//2) semantics."""
    def pool(x, k):
        p = k // 2
        return jax.lax.reduce_window(
            x, -jnp.inf, jax.lax.max,
            window_dimensions=(1, 1, k, k),
            window_strides=(1, 1, 1, 1),
            padding=((0, 0), (0, 0), (p, p), (p, p)))
    feats = [pool(x, k) for k in sorted(POOL_SIZES, reverse=True)] + [x]
    return jnp.concatenate(feats, axis=1)


if __name__ == "__main__":
    key = jax.random.PRNGKey(0)
    x = jax.random.normal(key, (2, 4, 16, 16), dtype=jnp.float32)

    y = spatial_pyramid_pooling(x)
    jax.block_until_ready(y)

    y_ref = _reference(x)
    assert y.shape == (2, 16, 16, 16), y.shape
    assert jnp.array_equal(y, y_ref), "Pallas SPP mismatch vs reference"
    print("KERNEL_OK")
</pallas_src>

<mosaic_0001>
module attributes {stable_mosaic.version = 11 : i64} {
  func.func @kernel(%arg0: i32, %arg1: i32, %arg2: memref<1x4x256xf32, #tpu.memory_space<vmem>>, %arg3: memref<1x256xi32, #tpu.memory_space<vmem>>, %arg4: memref<1x4x4x256xf32, #tpu.memory_space<vmem>>, %arg5: memref<4x320xf32, #tpu.memory_space<vmem>>, %arg6: memref<4x260xf32, #tpu.memory_space<vmem>>) attributes {dimension_semantics = [#tpu.dimension_semantics<parallel>, #tpu.dimension_semantics<parallel>], iteration_bounds = array<i64: 2, 1>, scalar_prefetch = 0 : i64, scratch_operands = 2 : i64, tpu.core_type = #tpu.core_type<tc>, window_params = [{transform_indices = @transform_0, window_bounds = array<i64: 1, 4, 256>}, {pipeline_mode = #tpu.pipeline_mode<synchronous>, transform_indices = @transform_1, window_bounds = array<i64: 1, 256>}, {transform_indices = @transform_2, window_bounds = array<i64: 1, 4, 4, 256>}]} {
    %c0 = arith.constant 0 : index
    %c0_0 = arith.constant 0 : index
    %c0_1 = arith.constant 0 : index
    %0 = vector.load %arg2[%c0, %c0_0, %c0_1] : memref<1x4x256xf32, #tpu.memory_space<vmem>>, vector<1x4x256xf32>
    %1 = vector.shape_cast %0 : vector<1x4x256xf32> to vector<4x256xf32>
    %c0_2 = arith.constant 0 : index
    %c3 = arith.constant 3 : index
    %c0_3 = arith.constant 0 : index
    %c0_4 = arith.constant 0 : index
    %2 = vector.load %arg4[%c0_2, %c3, %c0_3, %c0_4] : memref<1x4x4x256xf32, #tpu.memory_space<vmem>>, vector<1x1x4x256xf32>
    %3 = vector.shape_cast %2 : vector<1x1x4x256xf32> to vector<4x256xf32>
    %4 = vector.shape_cast %1 : vector<4x256xf32> to vector<1x1x4x256xf32>
    tpu.vector_store %arg4[%c0_2, %c3, %c0_3, %c0_4], %4 {strides = array<i32>} : memref<1x4x4x256xf32, #tpu.memory_space<vmem>>, vector<1x1x4x256xf32>,
    %cst = arith.constant 0xFF800000 : f32
    %5 = vector.broadcast %cst : f32 to vector<4x32xf32>
    %c0_5 = arith.constant 0 : index
    %c0_6 = arith.constant 0 : index
    %6 = vector.load %arg5[%c0_5, %c0_6] : memref<4x320xf32, #tpu.memory_space<vmem>>, vector<4x32xf32>
    tpu.vector_store %arg5[%c0_5, %c0_6], %5 {strides = array<i32>} : memref<4x320xf32, #tpu.memory_space<vmem>>, vector<4x32xf32>,
    %c0_7 = arith.constant 0 : index
    %c288 = arith.constant 288 : index
    %7 = vector.load %arg5[%c0_7, %c288] : memref<4x320xf32, #tpu.memory_space<vmem>>, vector<4x32xf32>
    tpu.vector_store %arg5[%c0_7, %c288], %5 {strides = array<i32>} : memref<4x320xf32, #tpu.memory_space<vmem>>, vector<4x32xf32>,
    %cst_8 = arith.constant 0xFF800000 : f32
    %8 = vector.broadcast %cst_8 : f32 to vector<4x2xf32>
    %c0_9 = arith.constant 0 : index
    %c0_10 = arith.constant 0 : index
    %9 = vector.load %arg6[%c0_9, %c0_10] : memref<4x260xf32, #tpu.memory_space<vmem>>, vector<4x2xf32>
    tpu.vector_store %arg6[%c0_9, %c0_10], %8 {strides = array<i32>} : memref<4x260xf32, #tpu.memory_space<vmem>>, vector<4x2xf32>,
    %c0_11 = arith.constant 0 : index
    %c258 = arith.constant 258 : index
    %10 = vector.load %arg6[%c0_11, %c258] : memref<4x260xf32, #tpu.memory_space<vmem>>, vector<4x2xf32>
    tpu.vector_store %arg6[%c0_11, %c258], %8 {strides = array<i32>} : memref<4x260xf32, #tpu.memory_space<vmem>>, vector<4x2xf32>,
    %c0_12 = arith.constant 0 : index
    %c0_13 = arith.constant 0 : index
    %11 = vector.load %arg3[%c0_12, %c0_13] : memref<1x256xi32, #tpu.memory_space<vmem>>, vector<1x256xi32>
    %12 = vector.shape_cast %11 : vector<1x256xi32> to vector<1x256xi32>
    %13 = vector.broadcast %12 : vector<1x256xi32> to vector<4x256xi32>
    %c2_i32 = arith.constant 2 : i32
    %14 = vector.broadcast %c2_i32 : i32 to vector<4x256xi32>
    %15 = arith.cmpi sge, %13, %14 : vector<4x256xi32>
    %c1_i32 = arith.constant 1 : i32
    %16 = vector.broadcast %c1_i32 : i32 to vector<4x256xi32>
    %17 = arith.cmpi sge, %13, %16 : vector<4x256xi32>
    %c15_i32 = arith.constant 15 : i32
    %18 = vector.broadcast %c15_i32 : i32 to vector<4x256xi32>
    %19 = arith.cmpi slt, %13, %18 : vector<4x256xi32>
    %c14_i32 = arith.constant 14 : i32
    %20 = vector.broadcast %c14_i32 : i32 to vector<4x256xi32>
    %21 = arith.cmpi slt, %13, %20 : vector<4x256xi32>
    %c0_14 = arith.constant 0 : index
    %c32 = arith.constant 32 : index
    %22 = vector.load %arg5[%c0_14, %c32] : memref<4x320xf32, #tpu.memory_space<vmem>>, vector<4x256xf32>
    tpu.vector_store %arg5[%c0_14, %c32], %1 {strides = array<i32>} : memref<4x320xf32, #tpu.memory_space<vmem>>, vector<4x256xf32>,
    %c0_15 = arith.constant 0 : index
    %c0_16 = arith.constant 0 : index
    %23 = vector.load %arg5[%c0_15, %c0_16] : memref<4x320xf32, #tpu.memory_space<vmem>>, vector<4x256xf32>
    %c0_17 = arith.constant 0 : index
    %c16 = arith.constant 16 : index
    %24 = vector.load %arg5[%c0_17, %c16] : memref<4x320xf32, #tpu.memory_space<vmem>>, vector<4x256xf32>
    %25 = arith.maximumf %23, %24 : vector<4x256xf32>
    %c0_18 = arith.constant 0 : index
    %c32_19 = arith.constant 32 : index
    %26 = vector.load %arg5[%c0_18, %c32_19] : memref<4x320xf32, #tpu.memory_space<vmem>>, vector<4x256xf32>
    %27 = arith.maximumf %25, %26 : vector<4x256xf32>
    %c0_20 = arith.constant 0 : index
    %c48 = arith.constant 48 : index
    %28 = vector.load %arg5[%c0_20, %c48] : memref<4x320xf32, #tpu.memory_space<vmem>>, vector<4x256xf32>
    %29 = arith.maximumf %27, %28 : vector<4x256xf32>
    %c0_21 = arith.constant 0 : index
    %c64 = arith.constant 64 : index
    %30 = vector.load %arg5[%c0_21, %c64] : memref<4x320xf32, #tpu.memory_space<vmem>>, vector<4x256xf32>
    %31 = arith.maximumf %29, %30 : vector<4x256xf32>
    %c0_22 = arith.constant 0 : index
    %c2 = arith.constant 2 : index
    %32 = vector.load %arg6[%c0_22, %c2] : memref<4x260xf32, #tpu.memory_space<vmem>>, vector<4x256xf32>
    tpu.vector_store %arg6[%c0_22, %c2], %31 {strides = array<i32>} : memref<4x260xf32, #tpu.memory_space<vmem>>, vector<4x256xf32>,
    %c0_23 = arith.constant 0 : index
    %c0_24 = arith.constant 0 : index
    %33 = vector.load %arg6[%c0_23, %c0_24] : memref<4x260xf32, #tpu.memory_space<vmem>>, vector<4x256xf32>
    %cst_25 = arith.constant 0xFF800000 : f32
    %34 = vector.broadcast %cst_25 : f32 to vector<4x256xf32>
    %35 = arith.select %15, %33, %34 : vector<4x256xi1>, vector<4x256xf32>
    %36 = arith.maximumf %31, %35 : vector<4x256xf32>
    %c0_26 = arith.constant 0 : index
    %c1 = arith.constant 1 : index
    %37 = vector.load %arg6[%c0_26, %c1] : memref<4x260xf32, #tpu.memory_space<vmem>>, vector<4x256xf32>
    %cst_27 = arith.constant 0xFF800000 : f32
    %38 = vector.broadcast %cst_27 : f32 to vector<4x256xf32>
    %39 = arith.select %17, %37, %38 : vector<4x256xi1>, vector<4x256xf32>
    %40 = arith.maximumf %36, %39 : vector<4x256xf32>
    %c0_28 = arith.constant 0 : index
    %c3_29 = arith.constant 3 : index
    %41 = vector.load %arg6[%c0_28, %c3_29] : memref<4x260xf32, #tpu.memory_space<vmem>>, vector<4x256xf32>
    %cst_30 = arith.constant 0xFF800000 : f32
    %42 = vector.broadcast %cst_30 : f32 to vector<4x256xf32>
    %43 = arith.select %19, %41, %42 : vector<4x256xi1>, vector<4x256xf32>
    %44 = arith.maximumf %40, %43 : vector<4x256xf32>
    %c0_31 = arith.constant 0 : index
    %c4 = arith.constant 4 : index
    %45 = vector.load %arg6[%c0_31, %c4] : memref<4x260xf32, #tpu.memory_space<vmem>>, vector<4x256xf32>
    %cst_32 = arith.constant 0xFF800000 : f32
    %46 = vector.broadcast %cst_32 : f32 to vector<4x256xf32>
    %47 = arith.select %21, %45, %46 : vector<4x256xi1>, vector<4x256xf32>
    %48 = arith.maximumf %44, %47 : vector<4x256xf32>
    %c0_33 = arith.constant 0 : index
    %c2_34 = arith.constant 2 : index
    %c0_35 = arith.constant 0 : index
    %c0_36 = arith.constant 0 : index
    %49 = vector.load %arg4[%c0_33, %c2_34, %c0_35, %c0_36] : memref<1x4x4x256xf32, #tpu.memory_space<vmem>>, vector<1x1x4x256xf32>
    %50 = vector.shape_cast %49 : vector<1x1x4x256xf32> to vector<4x256xf32>
    %51 = vector.shape_cast %48 : vector<4x256xf32> to vector<1x1x4x256xf32>
    tpu.vector_store %arg4[%c0_33, %c2_34, %c0_35, %c0_36], %51 {strides = array<i32>} : memref<1x4x4x256xf32, #tpu.memory_space<vmem>>, vector<1x1x4x256xf32>,
    %c0_37 = arith.constant 0 : index
    %c32_38 = arith.constant 32 : index
    %52 = vector.load %arg5[%c0_37, %c32_38] : memref<4x320xf32, #tpu.memory_space<vmem>>, vector<4x256xf32>
    tpu.vector_store %arg5[%c0_37, %c32_38], %48 {strides = array<i32>} : memref<4x320xf32, #tpu.memory_space<vmem>>, vector<4x256xf32>,
    %c0_39 = arith.constant 0 : index
    %c0_40 = arith.constant 0 : index
    %53 = vector.load %arg5[%c0_39, %c0_40] : memref<4x320xf32, #tpu.memory_space<vmem>>, vector<4x256xf32>
    %c0_41 = arith.constant 0 : index
    %c16_42 = arith.constant 16 : index
    %54 = vector.load %arg5[%c0_41, %c16_42] : memref<4x320xf32, #tpu.memory_space<vmem>>, vector<4x256xf32>
    %55 = arith.maximumf %53, %54 : vector<4x256xf32>
    %c0_43 = arith.constant 0 : index
    %c32_44 = arith.constant 32 : index
    %56 = vector.load %arg5[%c0_43, %c32_44] : memref<4x320xf32, #tpu.memory_space<vmem>>, vector<4x256xf32>
    %57 = arith.maximumf %55, %56 : vector<4x256xf32>
    %c0_45 = arith.constant 0 : index
    %c48_46 = arith.constant 48 : index
    %58 = vector.load %arg5[%c0_45, %c48_46] : memref<4x320xf32, #tpu.memory_space<vmem>>, vector<4x256xf32>
    %59 = arith.maximumf %57, %58 : vector<4x256xf32>
    %c0_47 = arith.constant 0 : index
    %c64_48 = arith.constant 64 : index
    %60 = vector.load %arg5[%c0_47, %c64_48] : memref<4x320xf32, #tpu.memory_space<vmem>>, vector<4x256xf32>
    %61 = arith.maximumf %59, %60 : vector<4x256xf32>
    %c0_49 = arith.constant 0 : index
    %c2_50 = arith.constant 2 : index
    %62 = vector.load %arg6[%c0_49, %c2_50] : memref<4x260xf32, #tpu.memory_space<vmem>>, vector<4x256xf32>
    tpu.vector_store %arg6[%c0_49, %c2_50], %61 {strides = array<i32>} : memref<4x260xf32, #tpu.memory_space<vmem>>, vector<4x256xf32>,
    %c0_51 = arith.constant 0 : index
    %c0_52 = arith.constant 0 : index
    %63 = vector.load %arg6[%c0_51, %c0_52] : memref<4x260xf32, #tpu.memory_space<vmem>>, vector<4x256xf32>
    %cst_53 = arith.constant 0xFF800000 : f32
    %64 = vector.broadcast %cst_53 : f32 to vector<4x256xf32>
    %65 = arith.select %15, %63, %64 : vector<4x256xi1>, vector<4x256xf32>
    %66 = arith.maximumf %61, %65 : vector<4x256xf32>
    %c0_54 = arith.constant 0 : index
    %c1_55 = arith.constant 1 : index
    %67 = vector.load %arg6[%c0_54, %c1_55] : memref<4x260xf32, #tpu.memory_space<vmem>>, vector<4x256xf32>
    %cst_56 = arith.constant 0xFF800000 : f32
    %68 = vector.broadcast %cst_56 : f32 to vector<4x256xf32>
    %69 = arith.select %17, %67, %68 : vector<4x256xi1>, vector<4x256xf32>
    %70 = arith.maximumf %66, %69 : vector<4x256xf32>
    %c0_57 = arith.constant 0 : index
    %c3_58 = arith.constant 3 : index
    %71 = vector.load %arg6[%c0_57, %c3_58] : memref<4x260xf32, #tpu.memory_space<vmem>>, vector<4x256xf32>
    %cst_59 = arith.constant 0xFF800000 : f32
    %72 = vector.broadcast %cst_59 : f32 to vector<4x256xf32>
    %73 = arith.select %19, %71, %72 : vector<4x256xi1>, vector<4x256xf32>
    %74 = arith.maximumf %70, %73 : vector<4x256xf32>
    %c0_60 = arith.constant 0 : index
    %c4_61 = arith.constant 4 : index
    %75 = vector.load %arg6[%c0_60, %c4_61] : memref<4x260xf32, #tpu.memory_space<vmem>>, vector<4x256xf32>
    %cst_62 = arith.constant 0xFF800000 : f32
    %76 = vector.broadcast %cst_62 : f32 to vector<4x256xf32>
    %77 = arith.select %21, %75, %76 : vector<4x256xi1>, vector<4x256xf32>
    %78 = arith.maximumf %74, %77 : vector<4x256xf32>
    %c0_63 = arith.constant 0 : index
    %c1_64 = arith.constant 1 : index
    %c0_65 = arith.constant 0 : index
    %c0_66 = arith.constant 0 : index
    %79 = vector.load %arg4[%c0_63, %c1_64, %c0_65, %c0_66] : memref<1x4x4x256xf32, #tpu.memory_space<vmem>>, vector<1x1x4x256xf32>
    %80 = vector.shape_cast %79 : vector<1x1x4x256xf32> to vector<4x256xf32>
    %81 = vector.shape_cast %78 : vector<4x256xf32> to vector<1x1x4x256xf32>
    tpu.vector_store %arg4[%c0_63, %c1_64, %c0_65, %c0_66], %81 {strides = array<i32>} : memref<1x4x4x256xf32, #tpu.memory_space<vmem>>, vector<1x1x4x256xf32>,
    %c0_67 = arith.constant 0 : index
    %c32_68 = arith.constant 32 : index
    %82 = vector.load %arg5[%c0_67, %c32_68] : memref<4x320xf32, #tpu.memory_space<vmem>>, vector<4x256xf32>
    tpu.vector_store %arg5[%c0_67, %c32_68], %78 {strides = array<i32>} : memref<4x320xf32, #tpu.memory_space<vmem>>, vector<4x256xf32>,
    %c0_69 = arith.constant 0 : index
    %c0_70 = arith.constant 0 : index
    %83 = vector.load %arg5[%c0_69, %c0_70] : memref<4x320xf32, #tpu.memory_space<vmem>>, vector<4x256xf32>
    %c0_71 = arith.constant 0 : index
    %c16_72 = arith.constant 16 : index
    %84 = vector.load %arg5[%c0_71, %c16_72] : memref<4x320xf32, #tpu.memory_space<vmem>>, vector<4x256xf32>
    %85 = arith.maximumf %83, %84 : vector<4x256xf32>
    %c0_73 = arith.constant 0 : index
    %c32_74 = arith.constant 32 : index
    %86 = vector.load %arg5[%c0_73, %c32_74] : memref<4x320xf32, #tpu.memory_space<vmem>>, vector<4x256xf32>
    %87 = arith.maximumf %85, %86 : vector<4x256xf32>
    %c0_75 = arith.constant 0 : index
    %c48_76 = arith.constant 48 : index
    %88 = vector.load %arg5[%c0_75, %c48_76] : memref<4x320xf32, #tpu.memory_space<vmem>>, vector<4x256xf32>
    %89 = arith.maximumf %87, %88 : vector<4x256xf32>
    %c0_77 = arith.constant 0 : index
    %c64_78 = arith.constant 64 : index
    %90 = vector.load %arg5[%c0_77, %c64_78] : memref<4x320xf32, #tpu.memory_space<vmem>>, vector<4x256xf32>
    %91 = arith.maximumf %89, %90 : vector<4x256xf32>
    %c0_79 = arith.constant 0 : index
    %c2_80 = arith.constant 2 : index
    %92 = vector.load %arg6[%c0_79, %c2_80] : memref<4x260xf32, #tpu.memory_space<vmem>>, vector<4x256xf32>
    tpu.vector_store %arg6[%c0_79, %c2_80], %91 {strides = array<i32>} : memref<4x260xf32, #tpu.memory_space<vmem>>, vector<4x256xf32>,
    %c0_81 = arith.constant 0 : index
    %c0_82 = arith.constant 0 : index
    %93 = vector.load %arg6[%c0_81, %c0_82] : memref<4x260xf32, #tpu.memory_space<vmem>>, vector<4x256xf32>
    %cst_83 = arith.constant 0xFF800000 : f32
    %94 = vector.broadcast %cst_83 : f32 to vector<4x256xf32>
    %95 = arith.select %15, %93, %94 : vector<4x256xi1>, vector<4x256xf32>
    %96 = arith.maximumf %91, %95 : vector<4x256xf32>
    %c0_84 = arith.constant 0 : index
    %c1_85 = arith.constant 1 : index
    %97 = vector.load %arg6[%c0_84, %c1_85] : memref<4x260xf32, #tpu.memory_space<vmem>>, vector<4x256xf32>
    %cst_86 = arith.constant 0xFF800000 : f32
    %98 = vector.broadcast %cst_86 : f32 to vector<4x256xf32>
    %99 = arith.select %17, %97, %98 : vector<4x256xi1>, vector<4x256xf32>
    %100 = arith.maximumf %96, %99 : vector<4x256xf32>
    %c0_87 = arith.constant 0 : index
    %c3_88 = arith.constant 3 : index
    %101 = vector.load %arg6[%c0_87, %c3_88] : memref<4x260xf32, #tpu.memory_space<vmem>>, vector<4x256xf32>
    %cst_89 = arith.constant 0xFF800000 : f32
    %102 = vector.broadcast %cst_89 : f32 to vector<4x256xf32>
    %103 = arith.select %19, %101, %102 : vector<4x256xi1>, vector<4x256xf32>
    %104 = arith.maximumf %100, %103 : vector<4x256xf32>
    %c0_90 = arith.constant 0 : index
    %c4_91 = arith.constant 4 : index
    %105 = vector.load %arg6[%c0_90, %c4_91] : memref<4x260xf32, #tpu.memory_space<vmem>>, vector<4x256xf32>
    %cst_92 = arith.constant 0xFF800000 : f32
    %106 = vector.broadcast %cst_92 : f32 to vector<4x256xf32>
    %107 = arith.select %21, %105, %106 : vector<4x256xi1>, vector<4x256xf32>
    %108 = arith.maximumf %104, %107 : vector<4x256xf32>
    %c0_93 = arith.constant 0 : index
    %c0_94 = arith.constant 0 : index
    %c0_95 = arith.constant 0 : index
    %c0_96 = arith.constant 0 : index
    %109 = vector.load %arg4[%c0_93, %c0_94, %c0_95, %c0_96] : memref<1x4x4x256xf32, #tpu.memory_space<vmem>>, vector<1x1x4x256xf32>
    %110 = vector.shape_cast %109 : vector<1x1x4x256xf32> to vector<4x256xf32>
    %111 = vector.shape_cast %108 : vector<4x256xf32> to vector<1x1x4x256xf32>
    tpu.vector_store %arg4[%c0_93, %c0_94, %c0_95, %c0_96], %111 {strides = array<i32>} : memref<1x4x4x256xf32, #tpu.memory_space<vmem>>, vector<1x1x4x256xf32>,
    return
  }
  func.func @transform_0(%arg0: i32, %arg1: i32) -> (i32, i32, i32) {
    %c0_i32 = arith.constant 0 : i32
    %c0_i32_0 = arith.constant 0 : i32
    return %arg0, %arg1, %c0_i32 : i32, i32, i32
  }
  func.func @transform_1(%arg0: i32, %arg1: i32) -> (i32, i32) {
    %c0_i32 = arith.constant 0 : i32
    %c0_i32_0 = arith.constant 0 : i32
    %c0_i32_1 = arith.constant 0 : i32
    return %c0_i32, %c0_i32_0 : i32, i32
  }
  func.func @transform_2(%arg0: i32, %arg1: i32) -> (i32, i32, i32, i32) {
    %c0_i32 = arith.constant 0 : i32
    %c0_i32_0 = arith.constant 0 : i32
    %c0_i32_1 = arith.constant 0 : i32
    return %arg0, %c0_i32, %arg1, %c0_i32_0 : i32, i32, i32, i32
  }
}

</mosaic_0001>

<llo_original>
// kernel: tpu_custom_call.1
$region0: #{tpu_custom_call.1}
  #allocation0 [shape = 'u32[]', space=smem, size = 0x4, offset = 0x4, fixed_abs, tag = 'smem constant byte address 0x4 - core index']
  #allocation1 [shape = 'u32[144,128]{1,0:T(1,128)}', space=vmem, size = 0x12000, scoped, tag = 'internal scratch']
  #allocation2 [shape = 'f32[4,320]{1,0:T(4,128)}', space=vmem, size = 0x1800, scoped, tag = 'scratch operand']
  #allocation3 [shape = 'f32[4,260]{1,0:T(4,128)}', space=vmem, size = 0x1800, scoped, tag = 'scratch operand']
  %s0 = inlined_call_operand.hbm [shape: f32[2,4,256], index: 0, kind: input, shape index: {}]
  %s1 = inlined_call_operand.hbm [shape: s32[1,256], index: 1, kind: input, shape index: {}]
  %s2 = inlined_call_operand.hbm [shape: f32[2,4,4,256], index: 2, kind: output, shape index: {}]
  %s3 = sld [smem:[#allocation0]]
  $region49: #{tpu_custom_call.1} parent=0
    _
  %s5 = ssub.s32 1, %s3
  %s6 = scalar_select 0, %s5, %s3
  $region1: #{tpu_custom_call.1} parent=0
    #allocation4 [shape = 'u8[8192]{0}', space=vmem, size = 0x2000, scoped, tag = 'input window, operand 0']
    #allocation5 [shape = 's32[2]{0}', space=sflag, size = 0x8, scoped, tag = 'scoped memory for tpu_custom_call.1']
    #allocation6 [shape = 's32[2]{0}', space=sflag, size = 0x8, scoped, tag = 'scoped memory for tpu_custom_call.1']
    #allocation7 [shape = 'u8[1024]{0}', space=vmem, size = 0x400, scoped, tag = 'input window, operand 1, single buffered']
    #allocation8 [shape = 's32[1]{0}', space=sflag, size = 0x4, scoped, tag = 'scoped memory for tpu_custom_call.1']
    #allocation9 [shape = 'u8[32768]{0}', space=vmem, size = 0x8000, scoped, tag = 'output window, operand 0']
    %7 = vsyncpa [#allocation5], 0
    %s8 = scalar_lea.sflag [#allocation5], 1
    %9 = vsyncpa %s8, 0
    %10 = vsyncpa [#allocation8], 0
    %11 = vsyncpa [#allocation6], 0
    %s12 = scalar_lea.sflag [#allocation6], 1
    %13 = vsyncpa %s12, 0
    loop: start=0, step=1, limit=4
    $region2: #{tpu_custom_call.1} parent=1 // loop_pre_header
      _
    $region3: #{tpu_custom_call.1} parent=1 // loop_header
      %s15 = sphi 0, %s19
      %p16 = scmp.ge.s32.totalorder %s15, 4
      %s22 = sphi 0, %s34
      %s23 = sphi 0, %s30
      %s24 = sphi 0, %s22
      %s25 = sphi 0, %s23
      %s26 = sphi 0, %s24
      %s27 = sphi 0, %s25
      %s39 = sphi 0, %s41
      %s42 = sphi 0, %s39
      %s43 = sphi 0, %s42
      %s59 = sphi 0, %s43
      %s63 = sphi 0, %s63
      %s65 = sphi 0, %s63
      %s66 = sphi 0, %s65
      %s80 = sphi 0, %s66
      %s88 = sphi 0, %s90
      %s91 = sphi 0, %s88
      %s92 = sphi 0, %s91
      %s108 = sphi 0, %s92
    $region4: #{tpu_custom_call.1} parent=1 // loop_header_branch
      %18 = sbr.rel (%p16) target = $region8
    $region5: #{tpu_custom_call.1} parent=1 // loop_body
      %s20 = ssub.s32 %s15, 1
      %s21 = ssub.s32 %s15, 2
      %s28 = sadd.s32 1, %s23
      %p29 = scmp.ge.s32.totalorder %s28, 1
      %s30 = scalar_select %p29, 0, %s28
      %s31 = sadd.s32 1, %s22
      %s32 = scalar_select %p29, %s31, %s22
      %p33 = scmp.ge.s32.totalorder %s32, 2
      %s34 = scalar_select %p33, 0, %s32
      %s35 = ssub.s32 %s22, %s34
      %s36 = ssub.s32 %s23, %s30
      %s37 = sor.u32 %s35, %s36
      %p38 = scmp.eq.s32.totalorder %s37, 0
      %s40 = sadd.s32 %s39, 1
      %s41 = scalar_select %p38, %s39, %s40
      %p44 = pneg %p38
      %p45 = scmp.eq.s32.totalorder %s15, 1
      %p46 = por %p44, %p45
      %p47 = scmp.ne.s32.totalorder %s39, %s42
      %p48 = scmp.eq.s32.totalorder %s15, 0
      %p49 = por %p47, %p48
      %p50 = scmp.ne.s32.totalorder %s39, %s42
      %p51 = scmp.eq.s32.totalorder %s20, 1
      %p52 = por %p50, %p51
      %p53 = scmp.ne.s32.totalorder %s42, %s43
      %p54 = scmp.eq.s32.totalorder %s20, 0
      %p55 = por %p53, %p54
      %p56 = scmp.ne.s32.totalorder %s42, %s43
      %p57 = scmp.eq.s32.totalorder %s21, 1
      %p58 = por %p56, %p57
      %p60 = scmp.ne.s32.totalorder %s43, %s59
      %p61 = scmp.eq.s32.totalorder %s21, 0
      %p62 = por %p60, %p61
      %s64 = sadd.s32 %s63, 1
      %p67 = scmp.eq.s32.totalorder %s15, 1
      %p68 = scmp.ne.s32.totalorder %s63, %s65
      %p69 = scmp.eq.s32.totalorder %s15, 0
      %p70 = por %p68, %p69
      %p71 = scmp.ne.s32.totalorder %s63, %s65
      %p72 = scmp.eq.s32.totalorder %s20, 1
      %p73 = por %p71, %p72
      %p74 = scmp.ne.s32.totalorder %s65, %s66
      %p75 = scmp.eq.s32.totalorder %s20, 0
      %p76 = por %p74, %p75
      %p77 = scmp.ne.s32.totalorder %s65, %s66
      %p78 = scmp.eq.s32.totalorder %s21, 1
      %p79 = por %p77, %p78
      %p81 = scmp.ne.s32.totalorder %s66, %s80
      %p82 = scmp.eq.s32.totalorder %s21, 0
      %p83 = por %p81, %p82
      %s84 = ssub.s32 %s22, %s34
      %s85 = ssub.s32 %s23, %s30
      %s86 = sor.u32 %s84, %s85
      %p87 = scmp.eq.s32.totalorder %s86, 0
      %s89 = sadd.s32 %s88, 1
      %s90 = scalar_select %p87, %s88, %s89
      %p93 = pneg %p87
      %p94 = scmp.eq.s32.totalorder %s15, 1
      %p95 = por %p93, %p94
      %p96 = scmp.ne.s32.totalorder %s88, %s91
      %p97 = scmp.eq.s32.totalorder %s15, 0
      %p98 = por %p96, %p97
      %p99 = scmp.ne.s32.totalorder %s88, %s91
      %p100 = scmp.eq.s32.totalorder %s20, 1
      %p101 = por %p99, %p100
      %p102 = scmp.ne.s32.totalorder %s91, %s92
      %p103 = scmp.eq.s32.totalorder %s20, 0
      %p104 = por %p102, %p103
      %p105 = scmp.ne.s32.totalorder %s91, %s92
      %p106 = scmp.eq.s32.totalorder %s21, 1
      %p107 = por %p105, %p106
      %p109 = scmp.ne.s32.totalorder %s92, %s108
      %p110 = scmp.eq.s32.totalorder %s21, 0
      %p111 = por %p109, %p110
      %p112 = scmp.le.s32.totalorder 1, %s15
      %p113 = scmp.lt.s32.totalorder %s15, 3
      %p114 = pnand %p112, %p113
      %p115 = pneg %p114
      // Predicated region
      $region9: #{tpu_custom_call.1} parent=5 // pred_check
        _
      $region10: #{tpu_custom_call.1} parent=5 // pred_check_branch
        %117 = sbr.rel (%p114) target = $region12
      $region11: #{tpu_custom_call.1} parent=5 // pred_region
        %s118 = ssub.s32 %s15, 1
        // Predicated region
        $region13: #{tpu_custom_call.1} parent=11 // pred_check
          %p119 = pneg %p76
        $region14: #{tpu_custom_call.1} parent=11 // pred_check_branch
          %121 = sbr.rel (%p119) target = $region16
        $region15: #{tpu_custom_call.1} parent=11 // pred_region
          %s123 = ssub.s32 32, 32
          %124 = vsyncadd [#allocation8], %s123
          %s126 = sshll.u32 [#allocation7], 4
          %s127 = int_to_ptr.vmem [resolvable:$true] %s126
          %129 = dma.hbm_to_vmem [thread:$0]  %s1, 32, %s127, [#allocation8]
        $region16: #{tpu_custom_call.1} parent=11 // pred_fallthru
          _
      $region12: #{tpu_custom_call.1} parent=5 // pred_fallthru
        _
      %p130 = scmp.lt.s32.totalorder %s15, 2
      // Predicated region
      $region17: #{tpu_custom_call.1} parent=5 // pred_check
        %p131 = pneg %p130
      $region18: #{tpu_custom_call.1} parent=5 // pred_check_branch
        %133 = sbr.rel (%p131) target = $region20
      $region19: #{tpu_custom_call.1} parent=5 // pred_region
        // Predicated region
        $region21: #{tpu_custom_call.1} parent=19 // pred_check
          %p134 = pneg %p49
        $region22: #{tpu_custom_call.1} parent=19 // pred_check_branch
          %136 = sbr.rel (%p134) target = $region24
        $region23: #{tpu_custom_call.1} parent=19 // pred_region
          %s137 = sand.u32 %s39, 1
          %s138 = scalar_lea.sflag [#allocation5], %s137
          %s139 = sand.u32 %s39, 1
          %s140 = smul.addr %s139, 8
          %s141 = scalar_lea.vmem [#allocation4], %s140
          %s143 = ssub.s32 128, 128
          %144 = vsyncadd %s138, %s143
          %s145 = smul.addr %s23, 2
          %s146 = smul.addr %s22, 2
          %s147 = sadd.s32 %s145, %s146
          %s148 = smul.addr %s147, 64
          %s149 = scalar_lea.hbm %s0, %s148
          %s151 = sshll.u32 %s141, 4
          %s152 = int_to_ptr.vmem [resolvable:$true] %s151
          %154 = dma.hbm_to_vmem [thread:$0]  %s149, 128, %s152, %s138
        $region24: #{tpu_custom_call.1} parent=19 // pred_fallthru
          _
      $region20: #{tpu_custom_call.1} parent=5 // pred_fallthru
        _
      %p155 = scmp.le.s32.totalorder 1, %s15
      %p156 = scmp.lt.s32.totalorder %s15, 3
      %p157 = pnand %p155, %p156
      %p158 = pneg %p157
      // Predicated region
      $region25: #{tpu_custom_call.1} parent=5 // pred_check
        _
      $region26: #{tpu_custom_call.1} parent=5 // pred_check_branch
        %160 = sbr.rel (%p157) target = $region28
      $region27: #{tpu_custom_call.1} parent=5 // pred_region
        %s161 = ssub.s32 %s15, 1
        %s162 = sand.u32 %s42, 1
        %s163 = scalar_lea.sflag [#allocation5], %s162
        %s164 = sand.u32 %s42, 1
        %s165 = smul.addr %s164, 8
        %s166 = scalar_lea.vmem [#allocation4], %s165
        // Predicated region
        $region29: #{tpu_custom_call.1} parent=27 // pred_check
          %p167 = pneg %p55
        $region30: #{tpu_custom_call.1} parent=27 // pred_check_branch
          %169 = sbr.rel (%p167) target = $region32
        $region31: #{tpu_custom_call.1} parent=27 // pred_region
          %170 = dma.done %s163, 128
        $region32: #{tpu_custom_call.1} parent=27 // pred_fallthru
          _
        // Predicated region
        $region33: #{tpu_custom_call.1} parent=27 // pred_check
          %p171 = pneg %p76
        $region34: #{tpu_custom_call.1} parent=27 // pred_check_branch
          %173 = sbr.rel (%p171) target = $region36
        $region35: #{tpu_custom_call.1} parent=27 // pred_region
          %174 = dma.done [#allocation8], 32
        $region36: #{tpu_custom_call.1} parent=27 // pred_fallthru
          _
        %s175 = sand.u32 %s42, 1
        %s176 = scalar_lea.sflag [#allocation5], %s175
        %s177 = sand.u32 %s42, 1
        %s178 = smul.addr %s177, 8
        %s179 = scalar_lea.vmem [#allocation4], %s178
        %p180 = pneg %p55
        %p181 = pneg %p52
        %p182 = pneg %p76
        %p183 = pneg %p73
        %p184 = pneg %p104
        %p185 = pneg %p101
        %s186 = sand.u32 %s91, 1
        %s187 = scalar_lea.sflag [#allocation6], %s186
        %s188 = sand.u32 %s91, 1
        %s189 = smul.addr %s188, 32
        %s190 = scalar_lea.vmem [#allocation9], %s189
        %v191 = vld [vmem:[%s166] sm:$0xff]
        %s192 = scalar_lea.vmem %s190, 24 [#allocation9]
        %193 = vst [vmem:[%s192] sm:$0xff] %v191
        %vm194 = vcmask 257024
        %195 = vst.msk [vmem:[#allocation2] sm:$0xf] %vm194, -inf
        %vm196 = vcmask 519424
        %197 = vst.msk [vmem:[#allocation2 + $0x8] sm:$0xf] %vm196, -inf
        %vm198 = vcmask 11264
        %199 = vst.msk [vmem:[#allocation3] sm:$0xf] %vm198, -inf
        %vm200 = vcmask 27664
        %201 = vst.msk [vmem:[#allocation3 + $0x8] sm:$0xf] %vm200, -inf
        %v202 = vld [vmem:[#allocation7] sm:$0x3]
        %v203 = vlaneseq
        %v204 = vshrl.u32 %v203, 7
        %v205 = vsub.s32 0, %v204
        %v206 = vrot.slane %v202, %v205
        %v207 = vlaneseq
        %v208 = vshrl.u32 %v207, 7
        %v209 = vsub.s32 1, %v208
        %v210 = vrot.slane %v202, %v209
        %vm211 = vcmp.ge.s32.totalorder %v206, 2
        %vm212 = vcmp.ge.s32.totalorder %v210, 2
        %vm213 = vcmp.ge.s32.totalorder %v206, 1
        %vm214 = vcmp.ge.s32.totalorder %v210, 1
        %vm215 = vcmp.lt.s32.totalorder %v206, 15
        %vm216 = vcmp.lt.s32.totalorder %v210, 15
        %vm217 = vcmp.lt.s32.totalorder %v206, 14
        %vm218 = vcmp.lt.s32.totalorder %v210, 14
        %220 = vrot.lane.b32.xlu0 %v191, 32
        %v221 = vpop.permute.xlu0 %220
        %v222 = vrot.slane %v221, 4
        %vm223 = vcmask 261120
        %v224 = vsel %vm223, %v222, %v221
        %vm227 = vcmask 1043712
        %vm228 = vcmask 1047556
        %vm229 = vmor %vm228, %vm227
        %230 = vst.msk [vmem:[#allocation2] sm:$0xff] %vm229, %v224
        %231 = vst.msk [vmem:[#allocation2 + $0x8] sm:$0xf] %vm194, %v222
        %v232 = vld [vmem:[#allocation2] sm:$0xff]
        %v233 = vld [vmem:[#allocation2 + $0x8] sm:$0xf]
        %236 = vrot.lane.b32.xlu0 %v232, 112
        %v237 = vpop.permute.xlu0 %236
        %238 = vrot.lane.b32.xlu0 %v233, 112
        %v239 = vpop.permute.xlu0 %238
        %v240 = vrot.slane %v237, 4
        %v241 = vrot.slane %v239, 4
        %vm242 = vcmask 1043456
        %v243 = vsel %vm242, %v240, %v241
        %vm244 = vcmask 916480
        %v245 = vsel %vm244, %v237, %v243
        %v247 = vmax.f32 %v232, %v245
        %248 = vrot.lane.b32.xlu0 %v232, 96
        %v249 = vpop.permute.xlu0 %248
        %250 = vrot.lane.b32.xlu0 %v233, 96
        %v251 = vpop.permute.xlu0 %250
        %v252 = vrot.slane %v249, 4
        %v253 = vrot.slane %v251, 4
        %v254 = vsel %vm242, %v252, %v253
        %vm255 = vcmask 785408
        %v256 = vsel %vm255, %v249, %v254
        %v258 = vmax.f32 %v247, %v256
        %259 = vrot.lane.b32.xlu0 %v232, 80
        %v260 = vpop.permute.xlu0 %259
        %261 = vrot.lane.b32.xlu0 %v233, 80
        %v262 = vpop.permute.xlu0 %261
        %v263 = vrot.slane %v260, 4
        %v264 = vrot.slane %v262, 4
        %v265 = vsel %vm242, %v263, %v264
        %vm266 = vcmask 654336
        %v267 = vsel %vm266, %v260, %v265
        %v269 = vmax.f32 %v258, %v267
        %270 = vrot.lane.b32.xlu0 %v232, 64
        %v271 = vpop.permute.xlu0 %270
        %272 = vrot.lane.b32.xlu0 %v233, 64
        %v273 = vpop.permute.xlu0 %272
        %v274 = vrot.slane %v271, 4
        %v275 = vrot.slane %v273, 4
        %v276 = vsel %vm242, %v274, %v275
        %vm277 = vcmask 523264
        %v278 = vsel %vm277, %v271, %v276
        %v280 = vmax.f32 %v269, %v278
        %282 = vrot.lane.b32.xlu0 %v280, 2
        %v283 = vpop.permute.xlu0 %282
        %v284 = vrot.slane %v283, 4
        %vm285 = vcmask 15360
        %v286 = vsel %vm285, %v284, %v283
        %vm289 = vcmask 1043472
        %vm290 = vmor %vm228, %vm289
        %291 = vst.msk [vmem:[#allocation3] sm:$0xff] %vm290, %v286
        %292 = vst.msk [vmem:[#allocation3 + $0x8] sm:$0xf] %vm198, %v284
        %v293 = vld [vmem:[#allocation3] sm:$0xff]
        %v295 = vcombine.high %v293, %v293
        %v297 = vsel %vm211, %v293, -inf
        %v298 = vsel %vm212, %v295, -inf
        %v301 = vcombine.low %v297, %v298
        %v303 = vmax.f32 %v280, %v301
        %v304 = vld [vmem:[#allocation3 + $0x8] sm:$0xf]
        %306 = vrot.lane.b32.xlu0 %v293, 127
        %v307 = vpop.permute.xlu0 %306
        %308 = vrot.lane.b32.xlu0 %v295, 127
        %v309 = vpop.permute.xlu0 %308
        %310 = vrot.lane.b32.xlu0 %v304, 127
        %v311 = vpop.permute.xlu0 %310
        %vm312 = vcmask 1039360
        %v313 = vsel %vm312, %v307, %v309
        %v314 = vsel %vm312, %v309, %v311
        %v317 = vsel %vm213, %v313, -inf
        %v318 = vsel %vm214, %v314, -inf
        %v321 = vcombine.low %v317, %v318
        %v323 = vmax.f32 %v303, %v321
        %324 = vrot.lane.b32.xlu0 %v293, 125
        %v325 = vpop.permute.xlu0 %324
        %326 = vrot.lane.b32.xlu0 %v295, 125
        %v327 = vpop.permute.xlu0 %326
        %328 = vrot.lane.b32.xlu0 %v304, 125
        %v329 = vpop.permute.xlu0 %328
        %vm330 = vcmask 1022976
        %v331 = vsel %vm330, %v325, %v327
        %v332 = vsel %vm330, %v327, %v329
        %v335 = vsel %vm215, %v331, -inf
        %v336 = vsel %vm216, %v332, -inf
        %v339 = vcombine.low %v335, %v336
        %v341 = vmax.f32 %v323, %v339
        %342 = vrot.lane.b32.xlu0 %v293, 124
        %v343 = vpop.permute.xlu0 %342
        %344 = vrot.lane.b32.xlu0 %v295, 124
        %v345 = vpop.permute.xlu0 %344
        %346 = vrot.lane.b32.xlu0 %v304, 124
        %v347 = vpop.permute.xlu0 %346
        %vm348 = vcmask 1014784
        %v349 = vsel %vm348, %v343, %v345
        %v350 = vsel %vm348, %v345, %v347
        %v353 = vsel %vm217, %v349, -inf
        %v354 = vsel %vm218, %v350, -inf
        %v357 = vcombine.low %v353, %v354
        %v359 = vmax.f32 %v341, %v357
        %s360 = scalar_lea.vmem %s190, 16 [#allocation9]
        %361 = vst [vmem:[%s360] sm:$0xff] %v359
        %363 = vrot.lane.b32.xlu0 %v359, 32
        %v364 = vpop.permute.xlu0 %363
        %v365 = vrot.slane %v364, 4
        %v366 = vsel %vm223, %v365, %v364
        %369 = vst.msk [vmem:[#allocation2] sm:$0xff] %vm229, %v366
        %370 = vst.msk [vmem:[#allocation2 + $0x8] sm:$0xf] %vm194, %v365
        %v371 = vld [vmem:[#allocation2] sm:$0xff]
        %v372 = vld [vmem:[#allocation2 + $0x8] sm:$0xf]
        %375 = vrot.lane.b32.xlu0 %v371, 112
        %v376 = vpop.permute.xlu0 %375
        %377 = vrot.lane.b32.xlu0 %v372, 112
        %v378 = vpop.permute.xlu0 %377
        %v379 = vrot.slane %v376, 4
        %v380 = vrot.slane %v378, 4
        %v381 = vsel %vm242, %v379, %v380
        %v382 = vsel %vm244, %v376, %v381
        %v384 = vmax.f32 %v371, %v382
        %385 = vrot.lane.b32.xlu0 %v371, 96
        %v386 = vpop.permute.xlu0 %385
        %387 = vrot.lane.b32.xlu0 %v372, 96
        %v388 = vpop.permute.xlu0 %387
        %v389 = vrot.slane %v386, 4
        %v390 = vrot.slane %v388, 4
        %v391 = vsel %vm242, %v389, %v390
        %v392 = vsel %vm255, %v386, %v391
        %v394 = vmax.f32 %v384, %v392
        %395 = vrot.lane.b32.xlu0 %v371, 80
        %v396 = vpop.permute.xlu0 %395
        %397 = vrot.lane.b32.xlu0 %v372, 80
        %v398 = vpop.permute.xlu0 %397
        %v399 = vrot.slane %v396, 4
        %v400 = vrot.slane %v398, 4
        %v401 = vsel %vm242, %v399, %v400
        %v402 = vsel %vm266, %v396, %v401
        %v404 = vmax.f32 %v394, %v402
        %405 = vrot.lane.b32.xlu0 %v371, 64
        %v406 = vpop.permute.xlu0 %405
        %407 = vrot.lane.b32.xlu0 %v372, 64
        %v408 = vpop.permute.xlu0 %407
        %v409 = vrot.slane %v406, 4
        %v410 = vrot.slane %v408, 4
        %v411 = vsel %vm242, %v409, %v410
        %v412 = vsel %vm277, %v406, %v411
        %v414 = vmax.f32 %v404, %v412
        %416 = vrot.lane.b32.xlu0 %v414, 2
        %v417 = vpop.permute.xlu0 %416
        %v418 = vrot.slane %v417, 4
        %v419 = vsel %vm285, %v418, %v417
        %422 = vst.msk [vmem:[#allocation3] sm:$0xff] %vm290, %v419
        %423 = vst.msk [vmem:[#allocation3 + $0x8] sm:$0xf] %vm198, %v418
        %v424 = vld [vmem:[#allocation3] sm:$0xff]
        %v426 = vcombine.high %v424, %v424
        %v428 = vsel %vm211, %v424, -inf
        %v429 = vsel %vm212, %v426, -inf
        %v432 = vcombine.low %v428, %v429
        %v434 = vmax.f32 %v414, %v432
        %v435 = vld [vmem:[#allocation3 + $0x8] sm:$0xf]
        %437 = vrot.lane.b32.xlu0 %v424, 127
        %v438 = vpop.permute.xlu0 %437
        %439 = vrot.lane.b32.xlu0 %v426, 127
        %v440 = vpop.permute.xlu0 %439
        %441 = vrot.lane.b32.xlu0 %v435, 127
        %v442 = vpop.permute.xlu0 %441
        %v443 = vsel %vm312, %v438, %v440
        %v444 = vsel %vm312, %v440, %v442
        %v447 = vsel %vm213, %v443, -inf
        %v448 = vsel %vm214, %v444, -inf
        %v451 = vcombine.low %v447, %v448
        %v453 = vmax.f32 %v434, %v451
        %454 = vrot.lane.b32.xlu0 %v424, 125
        %v455 = vpop.permute.xlu0 %454
        %456 = vrot.lane.b32.xlu0 %v426, 125
        %v457 = vpop.permute.xlu0 %456
        %458 = vrot.lane.b32.xlu0 %v435, 125
        %v459 = vpop.permute.xlu0 %458
        %v460 = vsel %vm330, %v455, %v457
        %v461 = vsel %vm330, %v457, %v459
        %v464 = vsel %vm215, %v460, -inf
        %v465 = vsel %vm216, %v461, -inf
        %v468 = vcombine.low %v464, %v465
        %v470 = vmax.f32 %v453, %v468
        %471 = vrot.lane.b32.xlu0 %v424, 124
        %v472 = vpop.permute.xlu0 %471
        %473 = vrot.lane.b32.xlu0 %v426, 124
        %v474 = vpop.permute.xlu0 %473
        %475 = vrot.lane.b32.xlu0 %v435, 124
        %v476 = vpop.permute.xlu0 %475
        %v477 = vsel %vm348, %v472, %v474
        %v478 = vsel %vm348, %v474, %v476
        %v481 = vsel %vm217, %v477, -inf
        %v482 = vsel %vm218, %v478, -inf
        %v485 = vcombine.low %v481, %v482
        %v487 = vmax.f32 %v470, %v485
        %s488 = scalar_lea.vmem %s190, 8 [#allocation9]
        %489 = vst [vmem:[%s488] sm:$0xff] %v487
        %491 = vrot.lane.b32.xlu0 %v487, 32
        %v492 = vpop.permute.xlu0 %491
        %v493 = vrot.slane %v492, 4
        %v494 = vsel %vm223, %v493, %v492
        %497 = vst.msk [vmem:[#allocation2] sm:$0xff] %vm229, %v494
        %498 = vst.msk [vmem:[#allocation2 + $0x8] sm:$0xf] %vm194, %v493
        %v499 = vld [vmem:[#allocation2] sm:$0xff]
        %v500 = vld [vmem:[#allocation2 + $0x8] sm:$0xf]
        %503 = vrot.lane.b32.xlu0 %v499, 112
        %v504 = vpop.permute.xlu0 %503
        %505 = vrot.lane.b32.xlu0 %v500, 112
        %v506 = vpop.permute.xlu0 %505
        %v507 = vrot.slane %v504, 4
        %v508 = vrot.slane %v506, 4
        %v509 = vsel %vm242, %v507, %v508
        %v510 = vsel %vm244, %v504, %v509
        %v512 = vmax.f32 %v499, %v510
        %513 = vrot.lane.b32.xlu0 %v499, 96
        %v514 = vpop.permute.xlu0 %513
        %515 = vrot.lane.b32.xlu0 %v500, 96
        %v516 = vpop.permute.xlu0 %515
        %v517 = vrot.slane %v514, 4
        %v518 = vrot.slane %v516, 4
        %v519 = vsel %vm242, %v517, %v518
        %v520 = vsel %vm255, %v514, %v519
        %v522 = vmax.f32 %v512, %v520
        %523 = vrot.lane.b32.xlu0 %v499, 80
        %v524 = vpop.permute.xlu0 %523
        %525 = vrot.lane.b32.xlu0 %v500, 80
        %v526 = vpop.permute.xlu0 %525
        %v527 = vrot.slane %v524, 4
        %v528 = vrot.slane %v526, 4
        %v529 = vsel %vm242, %v527, %v528
        %v530 = vsel %vm266, %v524, %v529
        %v532 = vmax.f32 %v522, %v530
        %533 = vrot.lane.b32.xlu0 %v499, 64
        %v534 = vpop.permute.xlu0 %533
        %535 = vrot.lane.b32.xlu0 %v500, 64
        %v536 = vpop.permute.xlu0 %535
        %v537 = vrot.slane %v534, 4
        %v538 = vrot.slane %v536, 4
        %v539 = vsel %vm242, %v537, %v538
        %v540 = vsel %vm277, %v534, %v539
        %v542 = vmax.f32 %v532, %v540
        %544 = vrot.lane.b32.xlu0 %v542, 2
        %v545 = vpop.permute.xlu0 %544
        %v546 = vrot.slane %v545, 4
        %v547 = vsel %vm285, %v546, %v545
        %550 = vst.msk [vmem:[#allocation3] sm:$0xff] %vm290, %v547
        %551 = vst.msk [vmem:[#allocation3 + $0x8] sm:$0xf] %vm198, %v546
        %v552 = vld [vmem:[#allocation3] sm:$0xff]
        %v554 = vcombine.high %v552, %v552
        %v556 = vsel %vm211, %v552, -inf
        %v557 = vsel %vm212, %v554, -inf
        %v560 = vcombine.low %v556, %v557
        %v562 = vmax.f32 %v542, %v560
        %v563 = vld [vmem:[#allocation3 + $0x8] sm:$0xf]
        %565 = vrot.lane.b32.xlu0 %v552, 127
        %v566 = vpop.permute.xlu0 %565
        %567 = vrot.lane.b32.xlu0 %v554, 127
        %v568 = vpop.permute.xlu0 %567
        %569 = vrot.lane.b32.xlu0 %v563, 127
        %v570 = vpop.permute.xlu0 %569
        %v571 = vsel %vm312, %v566, %v568
        %v572 = vsel %vm312, %v568, %v570
        %v575 = vsel %vm213, %v571, -inf
        %v576 = vsel %vm214, %v572, -inf
        %v579 = vcombine.low %v575, %v576
        %v581 = vmax.f32 %v562, %v579
        %582 = vrot.lane.b32.xlu0 %v552, 125
        %v583 = vpop.permute.xlu0 %582
        %584 = vrot.lane.b32.xlu0 %v554, 125
        %v585 = vpop.permute.xlu0 %584
        %586 = vrot.lane.b32.xlu0 %v563, 125
        %v587 = vpop.permute.xlu0 %586
        %v588 = vsel %vm330, %v583, %v585
        %v589 = vsel %vm330, %v585, %v587
        %v592 = vsel %vm215, %v588, -inf
        %v593 = vsel %vm216, %v589, -inf
        %v596 = vcombine.low %v592, %v593
        %v598 = vmax.f32 %v581, %v596
        %599 = vrot.lane.b32.xlu0 %v552, 124
        %v600 = vpop.permute.xlu0 %599
        %601 = vrot.lane.b32.xlu0 %v554, 124
        %v602 = vpop.permute.xlu0 %601
        %603 = vrot.lane.b32.xlu0 %v563, 124
        %v604 = vpop.permute.xlu0 %603
        %v605 = vsel %vm348, %v600, %v602
        %v606 = vsel %vm348, %v602, %v604
        %v609 = vsel %vm217, %v605, -inf
        %v610 = vsel %vm218, %v606, -inf
        %v613 = vcombine.low %v609, %v610
        %v615 = vmax.f32 %v598, %v613
        %616 = vst [vmem:[%s190] sm:$0xff] %v615
        %s617 = sand.u32 %s91, 1
        %s618 = scalar_lea.sflag [#allocation6], %s617
        %s619 = sand.u32 %s91, 1
        %s620 = smul.addr %s619, 32
        %s621 = scalar_lea.vmem [#allocation9], %s620
        // Predicated region
        $region37: #{tpu_custom_call.1} parent=27 // pred_check
          %p622 = pneg %p101
        $region38: #{tpu_custom_call.1} parent=27 // pred_check_branch
          %624 = sbr.rel (%p622) target = $region40
        $region39: #{tpu_custom_call.1} parent=27 // pred_region
          %s626 = ssub.s32 512, 512
          %627 = vsyncadd %s618, %s626
          %s628 = smul.addr %s25, 2
          %s629 = smul.addr %s24, 8
          %s630 = sadd.s32 %s628, %s629
          %s631 = smul.addr %s630, 64
          %s632 = scalar_lea.hbm %s2, %s631
          %s633 = sshll.u32 %s621, 4
          %s634 = int_to_ptr.vmem [resolvable:$true] %s633
          %639 = dma.vmem_to_hbm [thread:$0]  %s634, 512, %s632, %s618, 128, 128, 8
        $region40: #{tpu_custom_call.1} parent=27 // pred_fallthru
          _
      $region28: #{tpu_custom_call.1} parent=5 // pred_fallthru
        _
      %p640 = scmp.le.s32.totalorder 2, %s15
      // Predicated region
      $region41: #{tpu_custom_call.1} parent=5 // pred_check
        %p641 = pneg %p640
      $region42: #{tpu_custom_call.1} parent=5 // pred_check_branch
        %643 = sbr.rel (%p641) target = $region44
      $region43: #{tpu_custom_call.1} parent=5 // pred_region
        %s644 = ssub.s32 %s15, 2
        // Predicated region
        $region45: #{tpu_custom_call.1} parent=43 // pred_check
          %p645 = pneg %p107
        $region46: #{tpu_custom_call.1} parent=43 // pred_check_branch
          %647 = sbr.rel (%p645) target = $region48
        $region47: #{tpu_custom_call.1} parent=43 // pred_region
          %s648 = sand.u32 %s92, 1
          %s649 = scalar_lea.sflag [#allocation6], %s648
          %s650 = sand.u32 %s92, 1
          %s651 = smul.addr %s650, 32
          %s652 = scalar_lea.vmem [#allocation9], %s651
          %653 = dma.done %s649, 512
        $region48: #{tpu_custom_call.1} parent=43 // pred_fallthru
          _
      $region44: #{tpu_custom_call.1} parent=5 // pred_fallthru
        _
    $region6: #{tpu_custom_call.1} parent=1 // loop_footer
      %s19 = sadd.s32 1, %s15
    $region7: #{tpu_custom_call.1} parent=1 // loop_footer_branch
      %14 = sbr.rel target = $region3
    $region8: #{tpu_custom_call.1} parent=1 // loop_exit
      _
    %654 = vsyncpa [#allocation5], 1
    %s655 = scalar_lea.sflag [#allocation5], 1
    %656 = vsyncpa %s655, 1
    %657 = vsyncpa [#allocation8], 1
    %658 = vsyncpa [#allocation6], 1
    %s659 = scalar_lea.sflag [#allocation6], 1
    %660 = vsyncpa %s659, 1

</llo_original>
